<compile_context>
chip_gen: v5e
topology: v5e:2x2
jax: 0.10.0
libtpu: 0.0.40
codegen_flags: <defaults>
</compile_context>

<pallas_src>
import jax
import jax.numpy as jnp
from jax import lax
from jax.experimental import pallas as pl
from jax.experimental.pallas import tpu as pltpu


LANES = 1024           # lane-dense tile width (multiple of 128)
MAX_TILE_ROWS = 1024   # sublane rows per streamed tile (f32: 4 MiB / input / step)
ACC_MAX_ROWS = 256     # fixed-size f32 accumulator height (decoupled from tile)


def _cdiv(a, b):
    return (a + b - 1) // b


def _round_up(a, b):
    return _cdiv(a, b) * b


def _num_core_blocks():
    """Split the stream 2 ways only on devices with 2 TensorCores."""
    try:
        kind = jax.devices()[0].device_kind.lower()
    except Exception:
        return 1
    return 2 if any(t in kind for t in ("v7", "v5p", "v4")) else 1


def _build_kernel(rows, tm, acc_rows, n_chunks, blocks_total, steps_per_core):
    """rows/tm/... are static Python ints baked into the kernel."""

    def kernel(xr_ref, x_ref, mu_ref, lv_ref, out_ref, acc_ref):
        c = pl.program_id(0)                    # core-block ("parallel")
        i = pl.program_id(1)                    # streaming step ("arbitrary")
        b = c * steps_per_core + i              # global streaming-block index

        @pl.when(i == 0)
        def _init():
            acc_ref[...] = jnp.zeros_like(acc_ref)

        def accumulate(masked):
            # Chunked accumulation into the fixed-size accumulator; static,
            # 8-row-aligned slices of the (tm, LANES) tile.
            for r in range(n_chunks):
                r0 = r * acc_rows
                d = (xr_ref[pl.ds(r0, acc_rows), :]
                     - x_ref[pl.ds(r0, acc_rows), :]).astype(jnp.float32)
                sq = d * d
                if masked:
                    # Global row index of every element; rows beyond the valid
                    # slab (boundary padding / overhang blocks) contain garbage
                    # and are select-ed to exactly 0 before accumulation.
                    grow = (lax.broadcasted_iota(jnp.int32, (acc_rows, LANES), 0)
                            + (b * tm + r0))
                    sq = jnp.where(grow < rows, sq, 0.0)
                acc_ref[...] += sq

        @pl.when(b < blocks_total - 1)          # steady state: full blocks
        def _steady():
            accumulate(masked=False)

        @pl.when(b >= blocks_total - 1)         # last (possibly partial) block
        def _boundary():
            accumulate(masked=True)

        @pl.when(i == pl.num_programs(1) - 1)   # per-core epilogue
        def _epilogue():
            mse_part = jnp.sum(acc_ref[...])
            out_ref[0, 0] = mse_part

            @pl.when(c == 0)                    # KLD only once (core-block 0)
            def _kld():
                mu = mu_ref[...].astype(jnp.float32)
                lv = lv_ref[...].astype(jnp.float32)
                # Zero padding contributes 1 + 0 - 0 - exp(0) = 0 per element.
                kld = -0.5 * jnp.sum(1.0 + lv - mu * mu - jnp.exp(lv))
                out_ref[0, 0] = mse_part + kld

    return kernel


def custom_loss(x_recon, x, mu, logvar):
    """Pallas equivalent of CustomLoss.forward. Returns a scalar float32."""
    assert x_recon.shape == x.shape and x_recon.dtype == x.dtype
    assert mu.shape == logvar.shape

    dtype = x.dtype
    itemsize = jnp.dtype(dtype).itemsize
    row_align = 8 * max(1, 4 // itemsize)       # 8 f32 / 16 bf16 / 32 int8 rows

    n = int(x.size)
    xr_flat = x_recon.reshape(-1)
    x_flat = x.reshape(-1)

    rows = n // LANES                           # complete lane-rows
    mse_tail = 0.0

    if rows < row_align:
        # Whole tensor is tiny (< row_align * 4 KiB): one aligned padded tile.
        # Zero pads give diff == 0, so no masking correction needed.
        pad = row_align * LANES - n
        xr_main = jnp.pad(xr_flat, (0, pad)).reshape(row_align, LANES)
        x_main = jnp.pad(x_flat, (0, pad)).reshape(row_align, LANES)
        rows_k = row_align
    else:
        # No padded copy of the big stream: contiguous slice + reshape (free);
        # the <LANES flat remainder is summed with plain jnp (tiny).
        rows_k = rows
        xr_main = xr_flat[: rows * LANES].reshape(rows, LANES)
        x_main = x_flat[: rows * LANES].reshape(rows, LANES)
        tail = n - rows * LANES
        if tail:
            dt = (xr_flat[rows * LANES:] - x_flat[rows * LANES:]).astype(jnp.float32)
            mse_tail = jnp.sum(dt * dt)

    # Tile geometry: biggest aligned tile <= MAX_TILE_ROWS that is a multiple
    # of the fixed accumulator height (so the in-kernel chunk loop is exact).
    if rows_k >= MAX_TILE_ROWS:
        tm = MAX_TILE_ROWS
    else:
        tm = (rows_k // row_align) * row_align
        if tm > ACC_MAX_ROWS:
            tm = (tm // ACC_MAX_ROWS) * ACC_MAX_ROWS
    acc_rows = min(tm, ACC_MAX_ROWS)
    n_chunks = tm // acc_rows

    blocks_total = _cdiv(rows_k, tm)
    ncb = min(_num_core_blocks(), blocks_total)
    steps_per_core = _cdiv(blocks_total, ncb)

    # mu / logvar: tiny; lane-dense, fully resident; zero pad -> 0 KLD term.
    m = int(mu.size)
    m_pad = _round_up(max(m, 1), 8 * LANES) - m
    mu2 = jnp.pad(mu.reshape(-1), (0, m_pad)).reshape(-1, LANES)
    lv2 = jnp.pad(logvar.reshape(-1), (0, m_pad)).reshape(-1, LANES)

    def recon_map(c, i):
        b = c * steps_per_core + i
        # Clamp the (rare) overhang block of the second core-block to a valid
        # block; the kernel fully masks it to 0 via the unclamped offset.
        return (jnp.minimum(b, blocks_total - 1), 0)

    kernel = _build_kernel(rows_k, tm, acc_rows, n_chunks,
                           blocks_total, steps_per_core)

    mu_itemsize = jnp.dtype(mu.dtype).itemsize
    vmem_bytes = (4 * tm * LANES * itemsize            # 2 inputs x double buffer
                  + acc_rows * LANES * 4               # accumulator
                  + 2 * mu2.size * mu_itemsize
                  + (4 << 20))                         # headroom
    vmem_limit = int(min(max(vmem_bytes, 16 << 20), 64 << 20))

    cost = pl.CostEstimate(
        flops=3 * rows_k * LANES + 4 * int(mu2.size),
        transcendentals=int(mu2.size),
        bytes_accessed=2 * rows_k * LANES * itemsize
        + 2 * int(mu2.size) * mu_itemsize + ncb * 4,
    )

    out = pl.pallas_call(
        kernel,
        out_shape=jax.ShapeDtypeStruct((ncb, 1), jnp.float32),
        grid_spec=pltpu.PrefetchScalarGridSpec(
            num_scalar_prefetch=0,
            grid=(ncb, steps_per_core),
            in_specs=[
                pl.BlockSpec((tm, LANES), recon_map),            # x_recon tile
                pl.BlockSpec((tm, LANES), recon_map),            # x tile
                pl.BlockSpec(mu2.shape, lambda c, i: (0, 0)),    # mu (resident)
                pl.BlockSpec(lv2.shape, lambda c, i: (0, 0)),    # logvar
            ],
            out_specs=pl.BlockSpec((1, 1), lambda c, i: (c, 0),
                                   memory_space=pltpu.MemorySpace.SMEM),
            scratch_shapes=[pltpu.VMEM((acc_rows, LANES), jnp.float32)],
        ),
        compiler_params=pltpu.CompilerParams(
            # TODO(synk): on v7x, verify in xprof that axis 0 shards across
            # both TensorCores; if not, switch to pltpu.CORE_PARALLEL or an
            # explicit core_map split.
            dimension_semantics=("parallel", "arbitrary"),
            vmem_limit_bytes=vmem_limit,
        ),
        cost_estimate=cost,
    )(xr_main, x_main, mu2, lv2)

    return jnp.sum(out) + mse_tail


def _reference(x_recon, x, mu, logvar):
    mse = jnp.sum((x_recon.astype(jnp.float32) - x.astype(jnp.float32)) ** 2)
    kld = -0.5 * jnp.sum(1.0 + logvar - mu ** 2 - jnp.exp(logvar))
    return mse + kld


if __name__ == "__main__":
    key = jax.random.PRNGKey(0)
    loss_fn = jax.jit(custom_loss)

    cases = [
        ((4, 3, 32, 32), 32),   # 12 full lane-rows, partial last streamed tile
        ((2, 5, 33, 33), 16),   # ragged: 10 lane-rows + 650-element flat tail
    ]

    for shape, latent in cases:
        k1, k2, k3, k4, key = jax.random.split(key, 5)
        batch = shape[0]
        x_recon = jax.random.normal(k1, shape, dtype=jnp.float32)
        x = jax.random.normal(k2, shape, dtype=jnp.float32)
        mu = jax.random.normal(k3, (batch, latent), dtype=jnp.float32)
        logvar = jax.random.normal(k4, (batch, latent), dtype=jnp.float32) * 0.1

        loss = jax.block_until_ready(loss_fn(x_recon, x, mu, logvar))
        ref = jax.block_until_ready(_reference(x_recon, x, mu, logvar))
        assert jnp.allclose(loss, ref, rtol=1e-4, atol=1e-2), (shape, loss, ref)

    print("KERNEL_OK")
</pallas_src>

<mosaic_0001>
module attributes {stable_mosaic.version = 11 : i64} {
  func.func @kernel(%arg0: i32, %arg1: i32, %arg2: memref<8x1024xf32, #tpu.memory_space<vmem>>, %arg3: memref<8x1024xf32, #tpu.memory_space<vmem>>, %arg4: memref<8x1024xf32, #tpu.memory_space<vmem>>, %arg5: memref<8x1024xf32, #tpu.memory_space<vmem>>, %arg6: memref<1x1xf32, #tpu.memory_space<smem>>, %arg7: memref<8x1024xf32, #tpu.memory_space<vmem>>) attributes {dimension_semantics = [#tpu.dimension_semantics<parallel>, #tpu.dimension_semantics<arbitrary>], iteration_bounds = array<i64: 1, 2>, scalar_prefetch = 0 : i64, scratch_operands = 1 : i64, tpu.core_type = #tpu.core_type<tc>, window_params = [{transform_indices = @transform_0, window_bounds = array<i64: 8, 1024>}, {transform_indices = @transform_1, window_bounds = array<i64: 8, 1024>}, {pipeline_mode = #tpu.pipeline_mode<synchronous>, transform_indices = @transform_2, window_bounds = array<i64: 8, 1024>}, {pipeline_mode = #tpu.pipeline_mode<synchronous>, transform_indices = @transform_3, window_bounds = array<i64: 8, 1024>}, {transform_indices = @transform_4, window_bounds = array<i64: 1, 1>}]} {
    %c2_i32 = arith.constant 2 : i32
    %0 = arith.muli %arg0, %c2_i32 : i32
    %1 = arith.addi %0, %arg1 : i32
    %c0_i32 = arith.constant 0 : i32
    %2 = arith.cmpi eq, %arg1, %c0_i32 : i32
    %3 = arith.extui %2 : i1 to i32
    %c0_i32_0 = arith.constant 0 : i32
    %4 = arith.cmpi ne, %3, %c0_i32_0 : i32
    scf.if %4 {
      %cst = arith.constant 0.000000e+00 : f32
      %14 = vector.broadcast %cst : f32 to vector<8x1024xf32>
      %c0 = arith.constant 0 : index
      %c0_6 = arith.constant 0 : index
      %15 = vector.load %arg7[%c0, %c0_6] : memref<8x1024xf32, #tpu.memory_space<vmem>>, vector<8x1024xf32>
      tpu.vector_store %arg7[%c0, %c0_6], %14 {strides = array<i32>} : memref<8x1024xf32, #tpu.memory_space<vmem>>, vector<8x1024xf32>,
    } else {
    }
    %c1_i32 = arith.constant 1 : i32
    %5 = arith.cmpi slt, %1, %c1_i32 : i32
    %6 = arith.extui %5 : i1 to i32
    %c0_i32_1 = arith.constant 0 : i32
    %7 = arith.cmpi ne, %6, %c0_i32_1 : i32
    scf.if %7 {
      %c0 = arith.constant 0 : index
      %c0_6 = arith.constant 0 : index
      %14 = vector.load %arg2[%c0, %c0_6] : memref<8x1024xf32, #tpu.memory_space<vmem>>, vector<8x1024xf32>
      %c0_7 = arith.constant 0 : index
      %c0_8 = arith.constant 0 : index
      %15 = vector.load %arg3[%c0_7, %c0_8] : memref<8x1024xf32, #tpu.memory_space<vmem>>, vector<8x1024xf32>
      %16 = arith.subf %14, %15 : vector<8x1024xf32>
      %17 = arith.mulf %16, %16 : vector<8x1024xf32>
      %c0_9 = arith.constant 0 : index
      %c0_10 = arith.constant 0 : index
      %18 = vector.load %arg7[%c0_9, %c0_10] : memref<8x1024xf32, #tpu.memory_space<vmem>>, vector<8x1024xf32>
      %19 = arith.addf %18, %17 : vector<8x1024xf32>
      %c0_11 = arith.constant 0 : index
      %c0_12 = arith.constant 0 : index
      %20 = vector.load %arg7[%c0_11, %c0_12] : memref<8x1024xf32, #tpu.memory_space<vmem>>, vector<8x1024xf32>
      tpu.vector_store %arg7[%c0_11, %c0_12], %19 {strides = array<i32>} : memref<8x1024xf32, #tpu.memory_space<vmem>>, vector<8x1024xf32>,
    } else {
    }
    %c1_i32_2 = arith.constant 1 : i32
    %8 = arith.cmpi sge, %1, %c1_i32_2 : i32
    %9 = arith.extui %8 : i1 to i32
    %c0_i32_3 = arith.constant 0 : i32
    %10 = arith.cmpi ne, %9, %c0_i32_3 : i32
    scf.if %10 {
      %c0 = arith.constant 0 : index
      %c0_6 = arith.constant 0 : index
      %14 = vector.load %arg2[%c0, %c0_6] : memref<8x1024xf32, #tpu.memory_space<vmem>>, vector<8x1024xf32>
      %c0_7 = arith.constant 0 : index
      %c0_8 = arith.constant 0 : index
      %15 = vector.load %arg3[%c0_7, %c0_8] : memref<8x1024xf32, #tpu.memory_space<vmem>>, vector<8x1024xf32>
      %16 = arith.subf %14, %15 : vector<8x1024xf32>
      %17 = arith.mulf %16, %16 : vector<8x1024xf32>
      %18 = tpu.iota {dimensions = array<i32: 0>} : vector<8x1024xi32>
      %c8_i32 = arith.constant 8 : i32
      %19 = arith.muli %1, %c8_i32 : i32
      %c0_i32_9 = arith.constant 0 : i32
      %20 = arith.addi %19, %c0_i32_9 : i32
      %21 = vector.broadcast %20 : i32 to vector<8x1024xi32>
      %22 = arith.addi %18, %21 : vector<8x1024xi32>
      %c12_i32 = arith.constant 12 : i32
      %23 = vector.broadcast %c12_i32 : i32 to vector<8x1024xi32>
      %24 = arith.cmpi slt, %22, %23 : vector<8x1024xi32>
      %cst = arith.constant 0.000000e+00 : f32
      %25 = vector.broadcast %cst : f32 to vector<8x1024xf32>
      %26 = arith.select %24, %17, %25 : vector<8x1024xi1>, vector<8x1024xf32>
      %c0_10 = arith.constant 0 : index
      %c0_11 = arith.constant 0 : index
      %27 = vector.load %arg7[%c0_10, %c0_11] : memref<8x1024xf32, #tpu.memory_space<vmem>>, vector<8x1024xf32>
      %28 = arith.addf %27, %26 : vector<8x1024xf32>
      %c0_12 = arith.constant 0 : index
      %c0_13 = arith.constant 0 : index
      %29 = vector.load %arg7[%c0_12, %c0_13] : memref<8x1024xf32, #tpu.memory_space<vmem>>, vector<8x1024xf32>
      tpu.vector_store %arg7[%c0_12, %c0_13], %28 {strides = array<i32>} : memref<8x1024xf32, #tpu.memory_space<vmem>>, vector<8x1024xf32>,
    } else {
    }
    %c1_i32_4 = arith.constant 1 : i32
    %11 = arith.cmpi eq, %arg1, %c1_i32_4 : i32
    %12 = arith.extui %11 : i1 to i32
    %c0_i32_5 = arith.constant 0 : i32
    %13 = arith.cmpi ne, %12, %c0_i32_5 : i32
    scf.if %13 {
      %c0 = arith.constant 0 : index
      %c0_6 = arith.constant 0 : index
      %14 = vector.load %arg7[%c0, %c0_6] : memref<8x1024xf32, #tpu.memory_space<vmem>>, vector<8x1024xf32>
      %15 = vector.shape_cast %14 : vector<8x1024xf32> to vector<1x8x1024xf32>
      %cst = arith.constant dense<0.000000e+00> : vector<1xf32>
      %16 = vector.multi_reduction <add>, %15, %cst [1, 2] : vector<1x8x1024xf32> to vector<1xf32>
      %17 = vector.shape_cast %16 : vector<1xf32> to vector<1x1x1xf32>
      %18 = vector.extract %17[0, 0, 0] : f32 from vector<1x1x1xf32>
      %c0_7 = arith.constant 0 : index
      %c0_8 = arith.constant 0 : index
      %19 = memref.load %arg6[%c0_7, %c0_8] : memref<1x1xf32, #tpu.memory_space<smem>>
      memref.store %18, %arg6[%c0_7, %c0_8] : memref<1x1xf32, #tpu.memory_space<smem>>
      %c0_i32_9 = arith.constant 0 : i32
      %20 = arith.cmpi eq, %arg0, %c0_i32_9 : i32
      %21 = arith.extui %20 : i1 to i32
      %c0_i32_10 = arith.constant 0 : i32
      %22 = arith.cmpi ne, %21, %c0_i32_10 : i32
      scf.if %22 {
        %c0_11 = arith.constant 0 : index
        %c0_12 = arith.constant 0 : index
        %23 = vector.load %arg4[%c0_11, %c0_12] : memref<8x1024xf32, #tpu.memory_space<vmem>>, vector<8x1024xf32>
        %c0_13 = arith.constant 0 : index
        %c0_14 = arith.constant 0 : index
        %24 = vector.load %arg5[%c0_13, %c0_14] : memref<8x1024xf32, #tpu.memory_space<vmem>>, vector<8x1024xf32>
        %cst_15 = arith.constant 1.000000e+00 : f32
        %25 = vector.broadcast %cst_15 : f32 to vector<8x1024xf32>
        %26 = arith.addf %25, %24 : vector<8x1024xf32>
        %27 = arith.mulf %23, %23 : vector<8x1024xf32>
        %28 = arith.subf %26, %27 : vector<8x1024xf32>
        %29 = math.exp %24 : vector<8x1024xf32>
        %30 = arith.subf %28, %29 : vector<8x1024xf32>
        %31 = vector.shape_cast %30 : vector<8x1024xf32> to vector<1x8x1024xf32>
        %cst_16 = arith.constant dense<0.000000e+00> : vector<1xf32>
        %32 = vector.multi_reduction <add>, %31, %cst_16 [1, 2] : vector<1x8x1024xf32> to vector<1xf32>
        %33 = vector.shape_cast %32 : vector<1xf32> to vector<1x1x1xf32>
        %34 = vector.extract %33[0, 0, 0] : f32 from vector<1x1x1xf32>
        %cst_17 = arith.constant -5.000000e-01 : f32
        %35 = arith.mulf %cst_17, %34 : f32
        %36 = arith.addf %18, %35 : f32
        %c0_18 = arith.constant 0 : index
        %c0_19 = arith.constant 0 : index
        %37 = memref.load %arg6[%c0_18, %c0_19] : memref<1x1xf32, #tpu.memory_space<smem>>
        memref.store %36, %arg6[%c0_18, %c0_19] : memref<1x1xf32, #tpu.memory_space<smem>>
      } else {
      }
    } else {
    }
    return
  }
  func.func @transform_0(%arg0: i32, %arg1: i32) -> (i32, i32) {
    %c2_i32 = arith.constant 2 : i32
    %0 = arith.muli %arg0, %c2_i32 : i32
    %1 = arith.addi %0, %arg1 : i32
    %c1_i32 = arith.constant 1 : i32
    %2 = arith.minsi %1, %c1_i32 : i32
    %c0_i32 = arith.constant 0 : i32
    %c0_i32_0 = arith.constant 0 : i32
    return %2, %c0_i32 : i32, i32
  }
  func.func @transform_1(%arg0: i32, %arg1: i32) -> (i32, i32) {
    %c2_i32 = arith.constant 2 : i32
    %0 = arith.muli %arg0, %c2_i32 : i32
    %1 = arith.addi %0, %arg1 : i32
    %c1_i32 = arith.constant 1 : i32
    %2 = arith.minsi %1, %c1_i32 : i32
    %c0_i32 = arith.constant 0 : i32
    %c0_i32_0 = arith.constant 0 : i32
    return %2, %c0_i32 : i32, i32
  }
  func.func @transform_2(%arg0: i32, %arg1: i32) -> (i32, i32) {
    %c0_i32 = arith.constant 0 : i32
    %c0_i32_0 = arith.constant 0 : i32
    %c0_i32_1 = arith.constant 0 : i32
    return %c0_i32, %c0_i32_0 : i32, i32
  }
  func.func @transform_3(%arg0: i32, %arg1: i32) -> (i32, i32) {
    %c0_i32 = arith.constant 0 : i32
    %c0_i32_0 = arith.constant 0 : i32
    %c0_i32_1 = arith.constant 0 : i32
    return %c0_i32, %c0_i32_0 : i32, i32
  }
  func.func @transform_4(%arg0: i32, %arg1: i32) -> (i32, i32) {
    %c0_i32 = arith.constant 0 : i32
    %c0_i32_0 = arith.constant 0 : i32
    return %arg0, %c0_i32 : i32, i32
  }
}

</mosaic_0001>

<llo_original>
// kernel: custom_loss.1
$region0: #{custom_loss.1}
  #allocation0 [shape = 'u32[]', space=smem, size = 0x4, offset = 0x4, fixed_abs, tag = 'smem constant byte address 0x4 - core index']
  #allocation1 [shape = 'u32[72,128]{1,0:T(1,128)}', space=vmem, size = 0x9000, scoped, tag = 'internal scratch']
  #allocation2 [shape = 'f32[8,1024]{1,0:T(8,128)}', space=vmem, size = 0x8000, scoped, tag = 'scratch operand']
  %s0 = inlined_call_operand.vmem [shape: f32[12,1024], index: 0, kind: input, shape index: {}]
  %s1 = inlined_call_operand.vmem [shape: f32[12,1024], index: 1, kind: input, shape index: {}]
  %s2 = inlined_call_operand.vmem [shape: f32[8,1024], index: 2, kind: input, shape index: {}]
  %s3 = inlined_call_operand.vmem [shape: f32[8,1024], index: 3, kind: input, shape index: {}]
  %s4 = inlined_call_operand.hbm [shape: f32[1,1], index: 4, kind: output, shape index: {}]
  %s5 = sld [smem:[#allocation0]]
  $region69: #{custom_loss.1} parent=0
    _
  %s7 = ssub.s32 1, %s5
  %s8 = scalar_select 0, %s7, %s5
  $region1: #{custom_loss.1} parent=0
    #allocation3 [shape = 'u8[512]{0}', space=smem, size = 0x200, scoped, tag = 'output window, operand 0, single buffered']
    #allocation4 [shape = 's32[2]{0}', space=sflag, size = 0x8, scoped, tag = 'scoped memory for custom_loss.1']
    %9 = vsyncpa [#allocation4], 0
    loop: start=0, step=1, limit=4
    $region2: #{custom_loss.1} parent=1 // loop_pre_header
      _
    $region3: #{custom_loss.1} parent=1 // loop_header
      %s11 = sphi 0, %s15
      %p12 = scmp.ge.s32.totalorder %s11, 4
      %s18 = sphi 0, %s30
      %s19 = sphi 0, %s26
      %s20 = sphi 0, %s18
      %s21 = sphi 0, %s19
      %s22 = sphi 0, %s20
      %s23 = sphi 0, %s21
      %s41 = sphi 0, %s43
      %s44 = sphi 0, %s41
      %s45 = sphi 0, %s44
      %s61 = sphi 0, %s45
      %s75 = sphi 0, %s77
      %s78 = sphi 0, %s75
      %s79 = sphi 0, %s78
      %s95 = sphi 0, %s79
      %s99 = sphi 0, %s99
      %s101 = sphi 0, %s99
      %s102 = sphi 0, %s101
      %s116 = sphi 0, %s102
      %s120 = sphi 0, %s120
      %s122 = sphi 0, %s120
      %s123 = sphi 0, %s122
      %s137 = sphi 0, %s123
      %s143 = sphi 0, %s145
      %s146 = sphi 0, %s143
      %s147 = sphi 0, %s146
      %s163 = sphi 0, %s147
    $region4: #{custom_loss.1} parent=1 // loop_header_branch
      %14 = sbr.rel (%p12) target = $region8
    $region5: #{custom_loss.1} parent=1 // loop_body
      %s16 = ssub.s32 %s11, 1
      %s17 = ssub.s32 %s11, 2
      %s24 = sadd.s32 1, %s19
      %p25 = scmp.ge.s32.totalorder %s24, 2
      %s26 = scalar_select %p25, 0, %s24
      %s27 = sadd.s32 1, %s18
      %s28 = scalar_select %p25, %s27, %s18
      %p29 = scmp.ge.s32.totalorder %s28, 1
      %s30 = scalar_select %p29, 0, %s28
      %s31 = smul.u32 %s18, 2
      %s32 = sadd.s32 %s31, %s19
      %p33 = scmp.lt.s32.totalorder %s32, 1
      %s34 = scalar_select %p33, %s32, 1
      %s35 = smul.u32 %s30, 2
      %s36 = sadd.s32 %s35, %s26
      %p37 = scmp.lt.s32.totalorder %s36, 1
      %s38 = scalar_select %p37, %s36, 1
      %s39 = ssub.s32 %s34, %s38
      %p40 = scmp.eq.s32.totalorder %s39, 0
      %s42 = sadd.s32 %s41, 1
      %s43 = scalar_select %p40, %s41, %s42
      %p46 = pneg %p40
      %p47 = scmp.eq.s32.totalorder %s11, 1
      %p48 = por %p46, %p47
      %p49 = scmp.ne.s32.totalorder %s41, %s44
      %p50 = scmp.eq.s32.totalorder %s11, 0
      %p51 = por %p49, %p50
      %p52 = scmp.ne.s32.totalorder %s41, %s44
      %p53 = scmp.eq.s32.totalorder %s16, 1
      %p54 = por %p52, %p53
      %p55 = scmp.ne.s32.totalorder %s44, %s45
      %p56 = scmp.eq.s32.totalorder %s16, 0
      %p57 = por %p55, %p56
      %p58 = scmp.ne.s32.totalorder %s44, %s45
      %p59 = scmp.eq.s32.totalorder %s17, 1
      %p60 = por %p58, %p59
      %p62 = scmp.ne.s32.totalorder %s45, %s61
      %p63 = scmp.eq.s32.totalorder %s17, 0
      %p64 = por %p62, %p63
      %s65 = smul.u32 %s18, 2
      %s66 = sadd.s32 %s65, %s19
      %p67 = scmp.lt.s32.totalorder %s66, 1
      %s68 = scalar_select %p67, %s66, 1
      %s69 = smul.u32 %s30, 2
      %s70 = sadd.s32 %s69, %s26
      %p71 = scmp.lt.s32.totalorder %s70, 1
      %s72 = scalar_select %p71, %s70, 1
      %s73 = ssub.s32 %s68, %s72
      %p74 = scmp.eq.s32.totalorder %s73, 0
      %s76 = sadd.s32 %s75, 1
      %s77 = scalar_select %p74, %s75, %s76
      %p80 = pneg %p74
      %p81 = scmp.eq.s32.totalorder %s11, 1
      %p82 = por %p80, %p81
      %p83 = scmp.ne.s32.totalorder %s75, %s78
      %p84 = scmp.eq.s32.totalorder %s11, 0
      %p85 = por %p83, %p84
      %p86 = scmp.ne.s32.totalorder %s75, %s78
      %p87 = scmp.eq.s32.totalorder %s16, 1
      %p88 = por %p86, %p87
      %p89 = scmp.ne.s32.totalorder %s78, %s79
      %p90 = scmp.eq.s32.totalorder %s16, 0
      %p91 = por %p89, %p90
      %p92 = scmp.ne.s32.totalorder %s78, %s79
      %p93 = scmp.eq.s32.totalorder %s17, 1
      %p94 = por %p92, %p93
      %p96 = scmp.ne.s32.totalorder %s79, %s95
      %p97 = scmp.eq.s32.totalorder %s17, 0
      %p98 = por %p96, %p97
      %s100 = sadd.s32 %s99, 1
      %p103 = scmp.eq.s32.totalorder %s11, 1
      %p104 = scmp.ne.s32.totalorder %s99, %s101
      %p105 = scmp.eq.s32.totalorder %s11, 0
      %p106 = por %p104, %p105
      %p107 = scmp.ne.s32.totalorder %s99, %s101
      %p108 = scmp.eq.s32.totalorder %s16, 1
      %p109 = por %p107, %p108
      %p110 = scmp.ne.s32.totalorder %s101, %s102
      %p111 = scmp.eq.s32.totalorder %s16, 0
      %p112 = por %p110, %p111
      %p113 = scmp.ne.s32.totalorder %s101, %s102
      %p114 = scmp.eq.s32.totalorder %s17, 1
      %p115 = por %p113, %p114
      %p117 = scmp.ne.s32.totalorder %s102, %s116
      %p118 = scmp.eq.s32.totalorder %s17, 0
      %p119 = por %p117, %p118
      %s121 = sadd.s32 %s120, 1
      %p124 = scmp.eq.s32.totalorder %s11, 1
      %p125 = scmp.ne.s32.totalorder %s120, %s122
      %p126 = scmp.eq.s32.totalorder %s11, 0
      %p127 = por %p125, %p126
      %p128 = scmp.ne.s32.totalorder %s120, %s122
      %p129 = scmp.eq.s32.totalorder %s16, 1
      %p130 = por %p128, %p129
      %p131 = scmp.ne.s32.totalorder %s122, %s123
      %p132 = scmp.eq.s32.totalorder %s16, 0
      %p133 = por %p131, %p132
      %p134 = scmp.ne.s32.totalorder %s122, %s123
      %p135 = scmp.eq.s32.totalorder %s17, 1
      %p136 = por %p134, %p135
      %p138 = scmp.ne.s32.totalorder %s123, %s137
      %p139 = scmp.eq.s32.totalorder %s17, 0
      %p140 = por %p138, %p139
      %s141 = ssub.s32 %s18, %s30
      %p142 = scmp.eq.s32.totalorder %s141, 0
      %s144 = sadd.s32 %s143, 1
      %s145 = scalar_select %p142, %s143, %s144
      %p148 = pneg %p142
      %p149 = scmp.eq.s32.totalorder %s11, 1
      %p150 = por %p148, %p149
      %p151 = scmp.ne.s32.totalorder %s143, %s146
      %p152 = scmp.eq.s32.totalorder %s11, 0
      %p153 = por %p151, %p152
      %p154 = scmp.ne.s32.totalorder %s143, %s146
      %p155 = scmp.eq.s32.totalorder %s16, 1
      %p156 = por %p154, %p155
      %p157 = scmp.ne.s32.totalorder %s146, %s147
      %p158 = scmp.eq.s32.totalorder %s16, 0
      %p159 = por %p157, %p158
      %p160 = scmp.ne.s32.totalorder %s146, %s147
      %p161 = scmp.eq.s32.totalorder %s17, 1
      %p162 = por %p160, %p161
      %p164 = scmp.ne.s32.totalorder %s147, %s163
      %p165 = scmp.eq.s32.totalorder %s17, 0
      %p166 = por %p164, %p165
      %p167 = scmp.le.s32.totalorder 1, %s11
      %p168 = scmp.lt.s32.totalorder %s11, 3
      %p169 = pnand %p167, %p168
      %p170 = pneg %p169
      // Predicated region
      $region9: #{custom_loss.1} parent=5 // pred_check
        _
      $region10: #{custom_loss.1} parent=5 // pred_check_branch
        %172 = sbr.rel (%p169) target = $region12
      $region11: #{custom_loss.1} parent=5 // pred_region
        %s173 = ssub.s32 %s11, 1
        // Predicated region
        $region13: #{custom_loss.1} parent=11 // pred_check
          %p174 = pneg %p112
        $region14: #{custom_loss.1} parent=11 // pred_check_branch
          %176 = sbr.rel (%p174) target = $region16
        $region15: #{custom_loss.1} parent=11 // pred_region
          _
        $region16: #{custom_loss.1} parent=11 // pred_fallthru
          _
        // Predicated region
        $region17: #{custom_loss.1} parent=11 // pred_check
          %p177 = pneg %p133
        $region18: #{custom_loss.1} parent=11 // pred_check_branch
          %179 = sbr.rel (%p177) target = $region20
        $region19: #{custom_loss.1} parent=11 // pred_region
          _
        $region20: #{custom_loss.1} parent=11 // pred_fallthru
          _
      $region12: #{custom_loss.1} parent=5 // pred_fallthru
        _
      %p180 = scmp.lt.s32.totalorder %s11, 2
      // Predicated region
      $region21: #{custom_loss.1} parent=5 // pred_check
        %p181 = pneg %p180
      $region22: #{custom_loss.1} parent=5 // pred_check_branch
        %183 = sbr.rel (%p181) target = $region24
      $region23: #{custom_loss.1} parent=5 // pred_region
        // Predicated region
        $region25: #{custom_loss.1} parent=23 // pred_check
          %p184 = pneg %p51
        $region26: #{custom_loss.1} parent=23 // pred_check_branch
          %186 = sbr.rel (%p184) target = $region28
        $region27: #{custom_loss.1} parent=23 // pred_region
          %s187 = smul.u32 %s18, 2
          %s188 = sadd.s32 %s187, %s19
          %p189 = scmp.lt.s32.totalorder %s188, 1
          %s190 = scalar_select %p189, %s188, 1
          %p191 = scmp.lt.s32.totalorder %s190, 1
          %s192 = scalar_select %p191, %s190, 1
          %s193 = smul.addr %s192, 8
          %s194 = smul.addr %s193, 8
          %s195 = scalar_lea.vmem %s0, %s194
          %s196 = smul.u32 %s18, 2
          %s197 = sadd.s32 %s196, %s19
          %p198 = scmp.lt.s32.totalorder %s197, 1
          %s199 = scalar_select %p198, %s197, 1
        $region28: #{custom_loss.1} parent=23 // pred_fallthru
          _
        // Predicated region
        $region29: #{custom_loss.1} parent=23 // pred_check
          %p200 = pneg %p85
        $region30: #{custom_loss.1} parent=23 // pred_check_branch
          %202 = sbr.rel (%p200) target = $region32
        $region31: #{custom_loss.1} parent=23 // pred_region
          %s203 = smul.u32 %s18, 2
          %s204 = sadd.s32 %s203, %s19
          %p205 = scmp.lt.s32.totalorder %s204, 1
          %s206 = scalar_select %p205, %s204, 1
          %p207 = scmp.lt.s32.totalorder %s206, 1
          %s208 = scalar_select %p207, %s206, 1
          %s209 = smul.addr %s208, 8
          %s210 = smul.addr %s209, 8
          %s211 = scalar_lea.vmem %s1, %s210
          %s212 = smul.u32 %s18, 2
          %s213 = sadd.s32 %s212, %s19
          %p214 = scmp.lt.s32.totalorder %s213, 1
          %s215 = scalar_select %p214, %s213, 1
        $region32: #{custom_loss.1} parent=23 // pred_fallthru
          _
      $region24: #{custom_loss.1} parent=5 // pred_fallthru
        _
      %p216 = scmp.le.s32.totalorder 1, %s11
      %p217 = scmp.lt.s32.totalorder %s11, 3
      %p218 = pnand %p216, %p217
      %p219 = pneg %p218
      // Predicated region
      $region33: #{custom_loss.1} parent=5 // pred_check
        _
      $region34: #{custom_loss.1} parent=5 // pred_check_branch
        %221 = sbr.rel (%p218) target = $region36
      $region35: #{custom_loss.1} parent=5 // pred_region
        %s222 = ssub.s32 %s11, 1
        %s223 = smul.u32 %s20, 2
        %s224 = sadd.s32 %s223, %s21
        %p225 = scmp.lt.s32.totalorder %s224, 1
        %s226 = scalar_select %p225, %s224, 1
        %p227 = scmp.lt.s32.totalorder %s226, 1
        %s228 = scalar_select %p227, %s226, 1
        %s229 = smul.addr %s228, 8
        %s230 = smul.addr %s229, 8
        %s231 = scalar_lea.vmem %s0, %s230
        %p232 = pneg %p57
        %p233 = pneg %p54
        %s234 = smul.u32 %s20, 2
        %s235 = sadd.s32 %s234, %s21
        %p236 = scmp.lt.s32.totalorder %s235, 1
        %s237 = scalar_select %p236, %s235, 1
        %p238 = scmp.lt.s32.totalorder %s237, 1
        %s239 = scalar_select %p238, %s237, 1
        %s240 = smul.addr %s239, 8
        %s241 = smul.addr %s240, 8
        %s242 = scalar_lea.vmem %s1, %s241
        %p243 = pneg %p91
        %p244 = pneg %p88
        %p245 = pneg %p112
        %p246 = pneg %p109
        %p247 = pneg %p133
        %p248 = pneg %p130
        %p249 = pneg %p159
        %p250 = pneg %p156
        %s251 = smul.u32 %s20, 2
        %s252 = sadd.s32 %s251, %s21
        %p253 = scmp.lt.s32.totalorder %s252, 1
        %s254 = scalar_select %p253, %s252, 1
        %p255 = scmp.lt.s32.totalorder %s254, 1
        %s256 = scalar_select %p255, %s254, 1
        %s257 = smul.addr %s256, 8
        %s258 = smul.addr %s257, 8
        %s259 = scalar_lea.vmem %s0, %s258
        %s260 = smul.u32 %s20, 2
        %s261 = sadd.s32 %s260, %s21
        %p262 = scmp.lt.s32.totalorder %s261, 1
        %s263 = scalar_select %p262, %s261, 1
        %s264 = smul.u32 %s20, 2
        %s265 = sadd.s32 %s264, %s21
        %p266 = scmp.lt.s32.totalorder %s265, 1
        %s267 = scalar_select %p266, %s265, 1
        %p268 = scmp.lt.s32.totalorder %s267, 1
        %s269 = scalar_select %p268, %s267, 1
        %s270 = smul.addr %s269, 8
        %s271 = smul.addr %s270, 8
        %s272 = scalar_lea.vmem %s1, %s271
        %s273 = smul.u32 %s20, 2
        %s274 = sadd.s32 %s273, %s21
        %p275 = scmp.lt.s32.totalorder %s274, 1
        %s276 = scalar_select %p275, %s274, 1
        %s277 = smul.u32 %s20, 2
        %s278 = sadd.s32 %s277, %s21
        %p279 = scmp.eq.s32.totalorder %s21, 0
        // Predicated region
        $region37: #{custom_loss.1} parent=35 // pred_check
          %p280 = pneg %p279
        $region38: #{custom_loss.1} parent=35 // pred_check_branch
          %282 = sbr.rel (%p280) target = $region40
        $region39: #{custom_loss.1} parent=35 // pred_region
          %283 = vst [vmem:[#allocation2] sm:$0xff] 0.0
          %284 = vst [vmem:[#allocation2 + $0x8] sm:$0xff] 0.0
          %285 = vst [vmem:[#allocation2 + $0x10] sm:$0xff] 0.0
          %286 = vst [vmem:[#allocation2 + $0x18] sm:$0xff] 0.0
          %287 = vst [vmem:[#allocation2 + $0x20] sm:$0xff] 0.0
          %288 = vst [vmem:[#allocation2 + $0x28] sm:$0xff] 0.0
          %289 = vst [vmem:[#allocation2 + $0x30] sm:$0xff] 0.0
          %290 = vst [vmem:[#allocation2 + $0x38] sm:$0xff] 0.0
        $region40: #{custom_loss.1} parent=35 // pred_fallthru
          _
        %p291 = scmp.lt.s32.totalorder %s278, 1
        // Predicated region
        $region41: #{custom_loss.1} parent=35 // pred_check
          %p292 = pneg %p291
        $region42: #{custom_loss.1} parent=35 // pred_check_branch
          %294 = sbr.rel (%p292) target = $region44
        $region43: #{custom_loss.1} parent=35 // pred_region
          %v295 = vld [vmem:[%s259] sm:$0xff]
          %v296 = vld [vmem:[%s259 + $0x8] sm:$0xff]
          %v297 = vld [vmem:[%s259 + $0x10] sm:$0xff]
          %v298 = vld [vmem:[%s259 + $0x18] sm:$0xff]
          %v299 = vld [vmem:[%s259 + $0x20] sm:$0xff]
          %v300 = vld [vmem:[%s259 + $0x28] sm:$0xff]
          %v301 = vld [vmem:[%s259 + $0x30] sm:$0xff]
          %v302 = vld [vmem:[%s259 + $0x38] sm:$0xff]
          %v303 = vld [vmem:[%s272] sm:$0xff]
          %v304 = vld [vmem:[%s272 + $0x8] sm:$0xff]
          %v305 = vld [vmem:[%s272 + $0x10] sm:$0xff]
          %v306 = vld [vmem:[%s272 + $0x18] sm:$0xff]
          %v307 = vld [vmem:[%s272 + $0x20] sm:$0xff]
          %v308 = vld [vmem:[%s272 + $0x28] sm:$0xff]
          %v309 = vld [vmem:[%s272 + $0x30] sm:$0xff]
          %v310 = vld [vmem:[%s272 + $0x38] sm:$0xff]
          %v311 = vsub.f32 %v295, %v303
          %v312 = vsub.f32 %v296, %v304
          %v313 = vsub.f32 %v297, %v305
          %v314 = vsub.f32 %v298, %v306
          %v315 = vsub.f32 %v299, %v307
          %v316 = vsub.f32 %v300, %v308
          %v317 = vsub.f32 %v301, %v309
          %v318 = vsub.f32 %v302, %v310
          %v319 = vmul.f32 %v311, %v311
          %v320 = vmul.f32 %v312, %v312
          %v321 = vmul.f32 %v313, %v313
          %v322 = vmul.f32 %v314, %v314
          %v323 = vmul.f32 %v315, %v315
          %v324 = vmul.f32 %v316, %v316
          %v325 = vmul.f32 %v317, %v317
          %v326 = vmul.f32 %v318, %v318
          %v327 = vld [vmem:[#allocation2] sm:$0xff]
          %v328 = vld [vmem:[#allocation2 + $0x8] sm:$0xff]
          %v329 = vld [vmem:[#allocation2 + $0x10] sm:$0xff]
          %v330 = vld [vmem:[#allocation2 + $0x18] sm:$0xff]
          %v331 = vld [vmem:[#allocation2 + $0x20] sm:$0xff]
          %v332 = vld [vmem:[#allocation2 + $0x28] sm:$0xff]
          %v333 = vld [vmem:[#allocation2 + $0x30] sm:$0xff]
          %v334 = vld [vmem:[#allocation2 + $0x38] sm:$0xff]
          %v335 = vadd.f32 %v327, %v319
          %v336 = vadd.f32 %v328, %v320
          %v337 = vadd.f32 %v329, %v321
          %v338 = vadd.f32 %v330, %v322
          %v339 = vadd.f32 %v331, %v323
          %v340 = vadd.f32 %v332, %v324
          %v341 = vadd.f32 %v333, %v325
          %v342 = vadd.f32 %v334, %v326
          %343 = vst [vmem:[#allocation2] sm:$0xff] %v335
          %344 = vst [vmem:[#allocation2 + $0x8] sm:$0xff] %v336
          %345 = vst [vmem:[#allocation2 + $0x10] sm:$0xff] %v337
          %346 = vst [vmem:[#allocation2 + $0x18] sm:$0xff] %v338
          %347 = vst [vmem:[#allocation2 + $0x20] sm:$0xff] %v339
          %348 = vst [vmem:[#allocation2 + $0x28] sm:$0xff] %v340
          %349 = vst [vmem:[#allocation2 + $0x30] sm:$0xff] %v341
          %350 = vst [vmem:[#allocation2 + $0x38] sm:$0xff] %v342
        $region44: #{custom_loss.1} parent=35 // pred_fallthru
          _
        %p351 = scmp.ge.s32.totalorder %s278, 1
        // Predicated region
        $region45: #{custom_loss.1} parent=35 // pred_check
          %p352 = pneg %p351
        $region46: #{custom_loss.1} parent=35 // pred_check_branch
          %354 = sbr.rel (%p352) target = $region48
        $region47: #{custom_loss.1} parent=35 // pred_region
          %v355 = vld [vmem:[%s259] sm:$0xff]
          %v356 = vld [vmem:[%s259 + $0x8] sm:$0xff]
          %v357 = vld [vmem:[%s259 + $0x10] sm:$0xff]
          %v358 = vld [vmem:[%s259 + $0x18] sm:$0xff]
          %v359 = vld [vmem:[%s259 + $0x20] sm:$0xff]
          %v360 = vld [vmem:[%s259 + $0x28] sm:$0xff]
          %v361 = vld [vmem:[%s259 + $0x30] sm:$0xff]
          %v362 = vld [vmem:[%s259 + $0x38] sm:$0xff]
          %v363 = vld [vmem:[%s272] sm:$0xff]
          %v364 = vld [vmem:[%s272 + $0x8] sm:$0xff]
          %v365 = vld [vmem:[%s272 + $0x10] sm:$0xff]
          %v366 = vld [vmem:[%s272 + $0x18] sm:$0xff]
          %v367 = vld [vmem:[%s272 + $0x20] sm:$0xff]
          %v368 = vld [vmem:[%s272 + $0x28] sm:$0xff]
          %v369 = vld [vmem:[%s272 + $0x30] sm:$0xff]
          %v370 = vld [vmem:[%s272 + $0x38] sm:$0xff]
          %v371 = vsub.f32 %v355, %v363
          %v372 = vsub.f32 %v356, %v364
          %v373 = vsub.f32 %v357, %v365
          %v374 = vsub.f32 %v358, %v366
          %v375 = vsub.f32 %v359, %v367
          %v376 = vsub.f32 %v360, %v368
          %v377 = vsub.f32 %v361, %v369
          %v378 = vsub.f32 %v362, %v370
          %v379 = vmul.f32 %v371, %v371
          %v380 = vmul.f32 %v372, %v372
          %v381 = vmul.f32 %v373, %v373
          %v382 = vmul.f32 %v374, %v374
          %v383 = vmul.f32 %v375, %v375
          %v384 = vmul.f32 %v376, %v376
          %v385 = vmul.f32 %v377, %v377
          %v386 = vmul.f32 %v378, %v378
          %v387 = vlaneseq
          %v388 = vshrl.u32 %v387, 7
          %s389 = smul.u32 %s278, 8
          %v390 = vstv %s389
          %v391 = vadd.s32 %v388, %v390
          %vm392 = vcmp.lt.s32.totalorder %v391, 12
          %v393 = vsel %vm392, %v379, 0.0
          %v394 = vsel %vm392, %v380, 0.0
          %v395 = vsel %vm392, %v381, 0.0
          %v396 = vsel %vm392, %v382, 0.0
          %v397 = vsel %vm392, %v383, 0.0
          %v398 = vsel %vm392, %v384, 0.0
          %v399 = vsel %vm392, %v385, 0.0
          %v400 = vsel %vm392, %v386, 0.0
          %v401 = vld [vmem:[#allocation2] sm:$0xff]
          %v402 = vld [vmem:[#allocation2 + $0x8] sm:$0xff]
          %v403 = vld [vmem:[#allocation2 + $0x10] sm:$0xff]
          %v404 = vld [vmem:[#allocation2 + $0x18] sm:$0xff]
          %v405 = vld [vmem:[#allocation2 + $0x20] sm:$0xff]
          %v406 = vld [vmem:[#allocation2 + $0x28] sm:$0xff]
          %v407 = vld [vmem:[#allocation2 + $0x30] sm:$0xff]
          %v408 = vld [vmem:[#allocation2 + $0x38] sm:$0xff]
          %v409 = vadd.f32 %v401, %v393
          %v410 = vadd.f32 %v402, %v394
          %v411 = vadd.f32 %v403, %v395
          %v412 = vadd.f32 %v404, %v396
          %v413 = vadd.f32 %v405, %v397
          %v414 = vadd.f32 %v406, %v398
          %v415 = vadd.f32 %v407, %v399
          %v416 = vadd.f32 %v408, %v400
          %417 = vst [vmem:[#allocation2] sm:$0xff] %v409
          %418 = vst [vmem:[#allocation2 + $0x8] sm:$0xff] %v410
          %419 = vst [vmem:[#allocation2 + $0x10] sm:$0xff] %v411
          %420 = vst [vmem:[#allocation2 + $0x18] sm:$0xff] %v412
          %421 = vst [vmem:[#allocation2 + $0x20] sm:$0xff] %v413
          %422 = vst [vmem:[#allocation2 + $0x28] sm:$0xff] %v414
          %423 = vst [vmem:[#allocation2 + $0x30] sm:$0xff] %v415
          %424 = vst [vmem:[#allocation2 + $0x38] sm:$0xff] %v416
        $region48: #{custom_loss.1} parent=35 // pred_fallthru
          _
        %p425 = scmp.eq.s32.totalorder %s21, 1
        // Predicated region
        $region49: #{custom_loss.1} parent=35 // pred_check
          %p426 = pneg %p425
        $region50: #{custom_loss.1} parent=35 // pred_check_branch
          %428 = sbr.rel (%p426) target = $region52
        $region51: #{custom_loss.1} parent=35 // pred_region
          %v429 = vld [vmem:[#allocation2] sm:$0xff]
          %v430 = vld [vmem:[#allocation2 + $0x8] sm:$0xff]
          %v431 = vld [vmem:[#allocation2 + $0x10] sm:$0xff]
          %v432 = vld [vmem:[#allocation2 + $0x18] sm:$0xff]
          %v433 = vld [vmem:[#allocation2 + $0x20] sm:$0xff]
          %v434 = vld [vmem:[#allocation2 + $0x28] sm:$0xff]
          %v435 = vld [vmem:[#allocation2 + $0x30] sm:$0xff]
          %v436 = vld [vmem:[#allocation2 + $0x38] sm:$0xff]
          %v437 = vadd.f32 %v429, %v430
          %v438 = vadd.f32 %v437, %v431
          %v439 = vadd.f32 %v438, %v432
          %v440 = vadd.f32 %v439, %v433
          %v441 = vadd.f32 %v440, %v434
          %v442 = vadd.f32 %v441, %v435
          %v443 = vadd.f32 %v442, %v436
          %444 = vadd.xlane.f32.xlu0 %v443
          %v445 = vpop.xlane.xlu0 %444
          %v446 = vrot.slane %v445, 4
          %v447 = vadd.f32 %v445, %v446
          %v448 = vrot.slane %v447, 2
          %v449 = vadd.f32 %v447, %v448
          %v450 = vrot.slane %v449, 1
          %v451 = vadd.f32 %v449, %v450
          %s452 = vtos %v451
          %s453 = scalar_lea.smem [#allocation3], 0
          %454 = sst [smem:[%s453]] %s452
          %p455 = scmp.eq.s32.totalorder %s20, 0
          // Predicated region
          $region53: #{custom_loss.1} parent=51 // pred_check
            %p456 = pneg %p455
          $region54: #{custom_loss.1} parent=51 // pred_check_branch
            %458 = sbr.rel (%p456) target = $region56
          $region55: #{custom_loss.1} parent=51 // pred_region
            %v459 = vld [vmem:[%s2] sm:$0xff]
            %v460 = vld [vmem:[%s2 + $0x8] sm:$0xff]
            %v461 = vld [vmem:[%s2 + $0x10] sm:$0xff]
            %v462 = vld [vmem:[%s2 + $0x18] sm:$0xff]
            %v463 = vld [vmem:[%s2 + $0x20] sm:$0xff]
            %v464 = vld [vmem:[%s2 + $0x28] sm:$0xff]
            %v465 = vld [vmem:[%s2 + $0x30] sm:$0xff]
            %v466 = vld [vmem:[%s2 + $0x38] sm:$0xff]
            %v467 = vld [vmem:[%s3] sm:$0xff]
            %v468 = vld [vmem:[%s3 + $0x8] sm:$0xff]
            %v469 = vld [vmem:[%s3 + $0x10] sm:$0xff]
            %v470 = vld [vmem:[%s3 + $0x18] sm:$0xff]
            %v471 = vld [vmem:[%s3 + $0x20] sm:$0xff]
            %v472 = vld [vmem:[%s3 + $0x28] sm:$0xff]
            %v473 = vld [vmem:[%s3 + $0x30] sm:$0xff]
            %v474 = vld [vmem:[%s3 + $0x38] sm:$0xff]
            %v475 = vadd.f32 %v467, 1.0
            %v476 = vadd.f32 %v468, 1.0
            %v477 = vadd.f32 %v469, 1.0
            %v478 = vadd.f32 %v470, 1.0
            %v479 = vadd.f32 %v471, 1.0
            %v480 = vadd.f32 %v472, 1.0
            %v481 = vadd.f32 %v473, 1.0
            %v482 = vadd.f32 %v474, 1.0
            %v483 = vmul.f32 %v459, %v459
            %v484 = vmul.f32 %v460, %v460
            %v485 = vmul.f32 %v461, %v461
            %v486 = vmul.f32 %v462, %v462
            %v487 = vmul.f32 %v463, %v463
            %v488 = vmul.f32 %v464, %v464
            %v489 = vmul.f32 %v465, %v465
            %v490 = vmul.f32 %v466, %v466
            %v491 = vsub.f32 %v475, %v483
            %v492 = vsub.f32 %v476, %v484
            %v493 = vsub.f32 %v477, %v485
            %v494 = vsub.f32 %v478, %v486
            %v495 = vsub.f32 %v479, %v487
            %v496 = vsub.f32 %v480, %v488
            %v497 = vsub.f32 %v481, %v489
            %v498 = vsub.f32 %v482, %v490
            %v499 = vmul.f32 %v467, 1.442695
            %v500 = vpow.pop %v499
            %v501 = vmul.f32 %v468, 1.442695
            %v502 = vpow.pop %v501
            %v503 = vmul.f32 %v469, 1.442695
            %v504 = vpow.pop %v503
            %v505 = vmul.f32 %v470, 1.442695
            %v506 = vpow.pop %v505
            %v507 = vmul.f32 %v471, 1.442695
            %v508 = vpow.pop %v507
            %v509 = vmul.f32 %v472, 1.442695
            %v510 = vpow.pop %v509
            %v511 = vmul.f32 %v473, 1.442695
            %v512 = vpow.pop %v511
            %v513 = vmul.f32 %v474, 1.442695
            %v514 = vpow.pop %v513
            %v515 = vsub.f32 %v491, %v500
            %v516 = vsub.f32 %v492, %v502
            %v517 = vsub.f32 %v493, %v504
            %v518 = vsub.f32 %v494, %v506
            %v519 = vsub.f32 %v495, %v508
            %v520 = vsub.f32 %v496, %v510
            %v521 = vsub.f32 %v497, %v512
            %v522 = vsub.f32 %v498, %v514
            %v523 = vadd.f32 %v515, %v516
            %v524 = vadd.f32 %v523, %v517
            %v525 = vadd.f32 %v524, %v518
            %v526 = vadd.f32 %v525, %v519
            %v527 = vadd.f32 %v526, %v520
            %v528 = vadd.f32 %v527, %v521
            %v529 = vadd.f32 %v528, %v522
            %530 = vadd.xlane.f32.xlu0 %v529
            %v531 = vpop.xlane.xlu0 %530
            %v532 = vrot.slane %v531, 4
            %v533 = vadd.f32 %v531, %v532
            %v534 = vrot.slane %v533, 2
            %v535 = vadd.f32 %v533, %v534
            %v536 = vrot.slane %v535, 1
            %v537 = vadd.f32 %v535, %v536
            %s538 = vtos %v537
            %s539 = smul.f32 %s538, -0.5
            %s540 = sadd.f32 %s452, %s539
            %541 = sst [smem:[%s453]] %s540
          $region56: #{custom_loss.1} parent=51 // pred_fallthru
            _
        $region52: #{custom_loss.1} parent=35 // pred_fallthru
          _
        // Predicated region
        $region57: #{custom_loss.1} parent=35 // pred_check
          %p542 = pneg %p156
        $region58: #{custom_loss.1} parent=35 // pred_check_branch
          %544 = sbr.rel (%p542) target = $region60
        $region59: #{custom_loss.1} parent=35 // pred_region
          %546 = vsyncadd [#allocation4], 0
          %s547 = scalar_lea.hbm %s4, %s20
          %s549 = sshll.u32 %s547, 4
          %s550 = int_to_ptr.hbm [resolvable:$true] %s549
          %552 = dma.smem_to_hbm [#allocation3], 16, %s550, [#allocation4]
        $region60: #{custom_loss.1} parent=35 // pred_fallthru
          _
        // Predicated region
        $region61: #{custom_loss.1} parent=35 // pred_check
          %p553 = pneg %p156
        $region62: #{custom_loss.1} parent=35 // pred_check_branch
          %555 = sbr.rel (%p553) target = $region64
        $region63: #{custom_loss.1} parent=35 // pred_region
          %557 = dma.done [#allocation4], 16
        $region64: #{custom_loss.1} parent=35 // pred_fallthru
          _
        %558 = sfence
      $region36: #{custom_loss.1} parent=5 // pred_fallthru
        _
      %p559 = scmp.le.s32.totalorder 2, %s11
      // Predicated region
      $region65: #{custom_loss.1} parent=5 // pred_check
        %p560 = pneg %p559
      $region66: #{custom_loss.1} parent=5 // pred_check_branch
        %562 = sbr.rel (%p560) target = $region68
      $region67: #{custom_loss.1} parent=5 // pred_region
        %s563 = ssub.s32 %s11, 2
      $region68: #{custom_loss.1} parent=5 // pred_fallthru
        _
    $region6: #{custom_loss.1} parent=1 // loop_footer
      %s15 = sadd.s32 1, %s11
    $region7: #{custom_loss.1} parent=1 // loop_footer_branch
      %10 = sbr.rel target = $region3
    $region8: #{custom_loss.1} parent=1 // loop_exit
      _
    %564 = vsyncpa [#allocation4], 1
    %s565 = scalar_lea.sflag [#allocation4], 1
    %566 = vsyncpa %s565, 1

</llo_original>
